<compile_context>
chip_gen: v7x
topology: tpu7x:2x2x1
jax: 0.10.0
libtpu: 0.0.40
codegen_flags: <defaults>
</compile_context>

<pallas_src>
import functools

import jax
import jax.numpy as jnp
from jax.experimental import pallas as pl
from jax.experimental.pallas import tpu as pltpu

IN_FEATURES = 3
OUT_FEATURES = 6


def _linear_silu_kernel(x_ref, wt_ref, b_ref, o_ref):
    # x_ref : (tb, IN)   natural layout block of the input
    # wt_ref: (IN, OUT)  W^T (tiny, resident)
    # b_ref : (1, OUT)   bias row (broadcast over sublanes)
    # o_ref : (tb, OUT)  natural layout block of the output
    x = x_ref[...]
    wt = wt_ref[...]
    a = b_ref[...]                                  # (1, OUT) -> broadcasts over rows
    for k in range(IN_FEATURES):                    # unrolled: 3 VPU FMAs, MXU left idle
        a = a + x[:, k:k + 1] * wt[k:k + 1, :]      # (tb,1)*(1,OUT) -> (tb,OUT)
    # SiLU: a * sigmoid(a); exp goes to the EUP, reciprocal kept exact for 1e-5 match.
    z = pl.reciprocal(1.0 + jnp.exp(-a))
    o_ref[...] = (a * z).astype(o_ref.dtype)


def _round_up(n, m):
    return ((n + m - 1) // m) * m


def _pick_block_rows(batch):
    """Per-generation batch-block size + VMEM limit (chosen outside jit)."""
    kind = ""
    try:
        kind = jax.devices()[0].device_kind.lower()
    except Exception:
        pass
    if "v6" in kind:
        # 128 MiB physical VMEM: ~32 MiB of double-buffered blocks is comfortable.
        tb_max, vmem_limit = 16384, 64 << 20
    else:
        # v5e / v7x / unknown: stay under the 64 MiB (v7x) physical per-TC budget.
        tb_max, vmem_limit = 8192, 32 << 20

    if batch <= 1024:
        # Single exact block (block shape == full array dims): no padding, no masking.
        return batch, 32 << 20

    # Aim for >= 2 blocks so both TensorCores get work under ("parallel",) on v7x;
    # keep the block a multiple of 128 rows for clean (8,128) tiling.
    tb = min(tb_max, _round_up(-(-batch // 2), 128))
    return tb, vmem_limit


@functools.partial(jax.jit, static_argnames=("tb", "vmem_limit"))
def _linear_silu_call(x, w_t, b2, *, tb, vmem_limit):
    batch = x.shape[0]
    grid = (pl.cdiv(batch, tb),)
    return pl.pallas_call(
        _linear_silu_kernel,
        out_shape=jax.ShapeDtypeStruct((batch, OUT_FEATURES), x.dtype),
        grid_spec=pltpu.PrefetchScalarGridSpec(
            num_scalar_prefetch=0,
            grid=grid,
            in_specs=[
                pl.BlockSpec((tb, IN_FEATURES), lambda i: (i, 0)),
                pl.BlockSpec((IN_FEATURES, OUT_FEATURES), lambda i: (0, 0)),
                pl.BlockSpec((1, OUT_FEATURES), lambda i: (0, 0)),
            ],
            out_specs=pl.BlockSpec((tb, OUT_FEATURES), lambda i: (i, 0)),
        ),
        compiler_params=pltpu.CompilerParams(
            dimension_semantics=("parallel",),
            vmem_limit_bytes=vmem_limit,
        ),
    )(x, w_t, b2)


def linear_silu(x, weight, bias):
    """x: (B, 3) f32, weight: (6, 3) [PyTorch layout], bias: (6,) -> (B, 6)."""
    tb, vmem_limit = _pick_block_rows(x.shape[0])
    w_t = weight.T                             # (3, 6): 18 floats, negligible
    b2 = bias.reshape(1, OUT_FEATURES)
    return _linear_silu_call(x, w_t, b2, tb=tb, vmem_limit=vmem_limit)


def init_params(key):
    """Deterministic nn.Linear(3, 6)-style init: U(-1/sqrt(in), 1/sqrt(in))."""
    kw, kb = jax.random.split(key)
    bound = 1.0 / (IN_FEATURES ** 0.5)
    weight = jax.random.uniform(kw, (OUT_FEATURES, IN_FEATURES),
                                jnp.float32, -bound, bound)
    bias = jax.random.uniform(kb, (OUT_FEATURES,), jnp.float32, -bound, bound)
    return weight, bias


def _reference(x, weight, bias):
    a = x @ weight.T + bias
    return a * jax.nn.sigmoid(a)


if __name__ == "__main__":
    key = jax.random.PRNGKey(0)
    k_p, k_x1, k_x2 = jax.random.split(key, 3)
    weight, bias = init_params(k_p)

    # Primary small-shape check implied by nn.Linear(3, 6): x1 of shape (B, 3).
    B = 8
    x1 = jax.random.normal(k_x1, (B, IN_FEATURES), dtype=jnp.float32)
    out1 = jax.block_until_ready(linear_silu(x1, weight, bias))
    ref1 = _reference(x1, weight, bias)
    assert out1.shape == ref1.shape
    assert jnp.allclose(out1, ref1, atol=1e-5, rtol=1e-5), "mismatch vs reference (B=8)"

    # Secondary check: multi-block grid with a ragged last block (no wrapper padding).
    B2 = 5000
    x2 = jax.random.normal(k_x2, (B2, IN_FEATURES), dtype=jnp.float32)
    out2 = jax.block_until_ready(linear_silu(x2, weight, bias))
    ref2 = _reference(x2, weight, bias)
    assert out2.shape == ref2.shape
    assert jnp.allclose(out2, ref2, atol=1e-5, rtol=1e-5), "mismatch vs reference (B=5000)"

    print("KERNEL_OK")
</pallas_src>

<mosaic_0001>
module attributes {stable_mosaic.version = 11 : i64} {
  func.func @_linear_silu_kernel(%arg0: i32, %arg1: memref<8x3xf32, #tpu.memory_space<vmem>>, %arg2: memref<3x6xf32, #tpu.memory_space<vmem>>, %arg3: memref<1x6xf32, #tpu.memory_space<vmem>>, %arg4: memref<8x6xf32, #tpu.memory_space<vmem>>) attributes {dimension_semantics = [#tpu.dimension_semantics<parallel>], iteration_bounds = array<i64: 1>, scalar_prefetch = 0 : i64, scratch_operands = 0 : i64, tpu.core_type = #tpu.core_type<tc>, window_params = [{transform_indices = @transform_0, window_bounds = array<i64: 8, 3>}, {pipeline_mode = #tpu.pipeline_mode<synchronous>, transform_indices = @transform_1, window_bounds = array<i64: 3, 6>}, {pipeline_mode = #tpu.pipeline_mode<synchronous>, transform_indices = @transform_2, window_bounds = array<i64: 1, 6>}, {transform_indices = @transform_3, window_bounds = array<i64: 8, 6>}]} {
    %c0 = arith.constant 0 : index
    %c0_0 = arith.constant 0 : index
    %0 = vector.load %arg1[%c0, %c0_0] : memref<8x3xf32, #tpu.memory_space<vmem>>, vector<8x3xf32>
    %c0_1 = arith.constant 0 : index
    %c0_2 = arith.constant 0 : index
    %1 = vector.load %arg2[%c0_1, %c0_2] : memref<3x6xf32, #tpu.memory_space<vmem>>, vector<3x6xf32>
    %c0_3 = arith.constant 0 : index
    %c0_4 = arith.constant 0 : index
    %2 = vector.load %arg3[%c0_3, %c0_4] : memref<1x6xf32, #tpu.memory_space<vmem>>, vector<1x6xf32>
    %3 = vector.extract_strided_slice %0 {offsets = [0, 0], sizes = [8, 1], strides = [1, 1]} : vector<8x3xf32> to vector<8x1xf32>
    %4 = vector.extract_strided_slice %1 {offsets = [0, 0], sizes = [1, 6], strides = [1, 1]} : vector<3x6xf32> to vector<1x6xf32>
    %5 = vector.broadcast %3 : vector<8x1xf32> to vector<8x6xf32>
    %6 = vector.broadcast %4 : vector<1x6xf32> to vector<8x6xf32>
    %7 = arith.mulf %5, %6 : vector<8x6xf32>
    %8 = vector.broadcast %2 : vector<1x6xf32> to vector<8x6xf32>
    %9 = arith.addf %8, %7 : vector<8x6xf32>
    %10 = vector.extract_strided_slice %0 {offsets = [0, 1], sizes = [8, 1], strides = [1, 1]} : vector<8x3xf32> to vector<8x1xf32>
    %11 = vector.extract_strided_slice %1 {offsets = [1, 0], sizes = [1, 6], strides = [1, 1]} : vector<3x6xf32> to vector<1x6xf32>
    %12 = vector.broadcast %10 : vector<8x1xf32> to vector<8x6xf32>
    %13 = vector.broadcast %11 : vector<1x6xf32> to vector<8x6xf32>
    %14 = arith.mulf %12, %13 : vector<8x6xf32>
    %15 = arith.addf %9, %14 : vector<8x6xf32>
    %16 = vector.extract_strided_slice %0 {offsets = [0, 2], sizes = [8, 1], strides = [1, 1]} : vector<8x3xf32> to vector<8x1xf32>
    %17 = vector.extract_strided_slice %1 {offsets = [2, 0], sizes = [1, 6], strides = [1, 1]} : vector<3x6xf32> to vector<1x6xf32>
    %18 = vector.broadcast %16 : vector<8x1xf32> to vector<8x6xf32>
    %19 = vector.broadcast %17 : vector<1x6xf32> to vector<8x6xf32>
    %20 = arith.mulf %18, %19 : vector<8x6xf32>
    %21 = arith.addf %15, %20 : vector<8x6xf32>
    %cst = arith.constant 0.000000e+00 : f32
    %22 = vector.broadcast %cst : f32 to vector<8x6xf32>
    %23 = arith.subf %22, %21 : vector<8x6xf32>
    %24 = math.exp %23 : vector<8x6xf32>
    %cst_5 = arith.constant 1.000000e+00 : f32
    %25 = vector.broadcast %cst_5 : f32 to vector<8x6xf32>
    %26 = arith.addf %25, %24 : vector<8x6xf32>
    %27 = tpu.reciprocal %26 : vector<8x6xf32> -> vector<8x6xf32>
    %28 = arith.mulf %21, %27 : vector<8x6xf32>
    %c0_6 = arith.constant 0 : index
    %c0_7 = arith.constant 0 : index
    %29 = vector.load %arg4[%c0_6, %c0_7] : memref<8x6xf32, #tpu.memory_space<vmem>>, vector<8x6xf32>
    tpu.vector_store %arg4[%c0_6, %c0_7], %28 {strides = array<i32>} : memref<8x6xf32, #tpu.memory_space<vmem>>, vector<8x6xf32>,
    return
  }
  func.func @transform_0(%arg0: i32) -> (i32, i32) {
    %c0_i32 = arith.constant 0 : i32
    %c0_i32_0 = arith.constant 0 : i32
    return %arg0, %c0_i32 : i32, i32
  }
  func.func @transform_1(%arg0: i32) -> (i32, i32) {
    %c0_i32 = arith.constant 0 : i32
    %c0_i32_0 = arith.constant 0 : i32
    %c0_i32_1 = arith.constant 0 : i32
    return %c0_i32, %c0_i32_0 : i32, i32
  }
  func.func @transform_2(%arg0: i32) -> (i32, i32) {
    %c0_i32 = arith.constant 0 : i32
    %c0_i32_0 = arith.constant 0 : i32
    %c0_i32_1 = arith.constant 0 : i32
    return %c0_i32, %c0_i32_0 : i32, i32
  }
  func.func @transform_3(%arg0: i32) -> (i32, i32) {
    %c0_i32 = arith.constant 0 : i32
    %c0_i32_0 = arith.constant 0 : i32
    return %arg0, %c0_i32 : i32, i32
  }
}

</mosaic_0001>

<llo_original>
// kernel: _linear_silu_call.1
$region0: #{_linear_silu_call.1}
  #allocation0 [shape = 'u32[]', space=smem, size = 0x4, offset = 0x4, fixed_abs, tag = 'smem constant byte address 0x4 - core index']
  #allocation1 [shape = 'u32[144,128]{1,0:T(1,128)}', space=vmem, size = 0x12000, scoped, tag = 'internal scratch']
  %s0 = inlined_call_operand.vmem [shape: f32[8,3], index: 0, kind: input, shape index: {}]
  %s1 = inlined_call_operand.vmem [shape: f32[3,6], index: 1, kind: input, shape index: {}]
  %s2 = inlined_call_operand.vmem [shape: f32[1,6], index: 2, kind: input, shape index: {}]
  %s3 = inlined_call_operand.hbm [shape: f32[8,6], index: 3, kind: output, shape index: {}]
  %s4 = sld [smem:[#allocation0]]
  $region22: #{_linear_silu_call.1} parent=0
    _
  %s6 = ssub.s32 1, %s4
  %s7 = scalar_select 0, %s6, %s4
  $region1: #{_linear_silu_call.1} parent=0
    #allocation2 [shape = 'u8[4096]{0}', space=vmem, size = 0x1000, scoped, tag = 'output window, operand 0, single buffered']
    #allocation3 [shape = 's32[1]{0}', space=sflag, size = 0x4, scoped, tag = 'scoped memory for _linear_silu_call.1']
    %8 = vsyncpa [#allocation3], 0
    // Predicated region
    $region2: #{_linear_silu_call.1} parent=1 // pred_check
      _
    $region3: #{_linear_silu_call.1} parent=1 // pred_check_branch
      %10 = sbr.rel (0) target = $region5
    $region4: #{_linear_silu_call.1} parent=1 // pred_region
      _
    $region5: #{_linear_silu_call.1} parent=1 // pred_fallthru
      _
    // Predicated region
    $region6: #{_linear_silu_call.1} parent=1 // pred_check
      _
    $region7: #{_linear_silu_call.1} parent=1 // pred_check_branch
      %12 = sbr.rel (0) target = $region9
    $region8: #{_linear_silu_call.1} parent=1 // pred_region
      _
    $region9: #{_linear_silu_call.1} parent=1 // pred_fallthru
      _
    // Predicated region
    $region10: #{_linear_silu_call.1} parent=1 // pred_check
      _
    $region11: #{_linear_silu_call.1} parent=1 // pred_check_branch
      %14 = sbr.rel (0) target = $region13
    $region12: #{_linear_silu_call.1} parent=1 // pred_region
      _
    $region13: #{_linear_silu_call.1} parent=1 // pred_fallthru
      _
    %v15 = vld [vmem:[%s0] sm:$0xff]
    %v16 = vld [vmem:[%s1] sm:$0x7]
    %v17 = vld [vmem:[%s2] sm:$0x1]
    %19 = vset.pattern.permute.xlu0 0
    %20 = vperm.xlu0 %19, %v15
    %v21 = vpop.permute.xlu0 %20
    %v23 = vlaneseq
    %v24 = vshrl.u32 %v23, 7
    %v25 = vsub.s32 0, %v24
    %v26 = vrot.slane %v16, %v25
    %v27 = vmul.f32 %v21, %v26
    %v29 = vlaneseq
    %v30 = vshrl.u32 %v29, 7
    %v31 = vsub.s32 0, %v30
    %v32 = vrot.slane %v17, %v31
    %v34 = vadd.f32 %v32, %v27
    %35 = vset.pattern.permute.xlu0 1
    %36 = vperm.xlu0 %35, %v15
    %v37 = vpop.permute.xlu0 %36
    %v39 = vlaneseq
    %v40 = vshrl.u32 %v39, 7
    %v41 = vsub.s32 1, %v40
    %v42 = vrot.slane %v16, %v41
    %v43 = vmul.f32 %v37, %v42
    %v44 = vadd.f32 %v34, %v43
    %45 = vset.pattern.permute.xlu0 2
    %46 = vperm.xlu0 %45, %v15
    %v47 = vpop.permute.xlu0 %46
    %v49 = vlaneseq
    %v50 = vshrl.u32 %v49, 7
    %v51 = vsub.s32 2, %v50
    %v52 = vrot.slane %v16, %v51
    %v53 = vmul.f32 %v47, %v52
    %v54 = vadd.f32 %v44, %v53
    %v55 = vsub.f32 0.0, %v54
    %v56 = vmul.f32 %v55, 1.442695
    %v57 = vpow.pop %v56
    %v58 = vadd.f32 %v57, 1.0
    %v59 = vrcp.pop %v58
    %v60 = vmul.f32 %v54, %v59
    %vm61 = vcmask 48128
    %62 = vst.msk [vmem:[#allocation2] sm:$0xff] %vm61, %v60
    // Predicated region
    $region14: #{_linear_silu_call.1} parent=1 // pred_check
      _
    $region15: #{_linear_silu_call.1} parent=1 // pred_check_branch
      %64 = sbr.rel (0) target = $region17
    $region16: #{_linear_silu_call.1} parent=1 // pred_region
      %s66 = ssub.s32 128, 128
      %67 = vsyncadd [#allocation3], %s66
      %s69 = sshll.u32 [#allocation2], 4
      %s70 = int_to_ptr.vmem [resolvable:$true] %s69
      %72 = dma.vmem_to_hbm [thread:$0]  %s70, 128, %s3, [#allocation3]
    $region17: #{_linear_silu_call.1} parent=1 // pred_fallthru
      _
    // Predicated region
    $region18: #{_linear_silu_call.1} parent=1 // pred_check
      _
    $region19: #{_linear_silu_call.1} parent=1 // pred_check_branch
      %74 = sbr.rel (0) target = $region21
    $region20: #{_linear_silu_call.1} parent=1 // pred_region
      %75 = dma.done [#allocation3], 128
    $region21: #{_linear_silu_call.1} parent=1 // pred_fallthru
      _
    %76 = vsyncpa [#allocation3], 1

</llo_original>
